<compile_context>
chip_gen: v6e
topology: v6e:2x2x1
jax: 0.10.0
libtpu: 0.0.40
codegen_flags: <defaults>
</compile_context>

<pallas_src>
import jax
import jax.numpy as jnp
from jax.experimental import pallas as pl
from jax.experimental.pallas import tpu as pltpu

DECONV_C = 256  # hidden channel count fixed by the module (out_channels=256)
BN_EPS = 1e-5


def _head_kernel(x_ref, w_ref, b_ref, out_ref):
    """sigmoid(W @ x + b) on one (C_in, THW) pixel tile.

    x_ref:   (1, C_in, THW)     input pixels, channels on sublanes, pixels on lanes
    w_ref:   (4*C_out, C_in)    fused BN * deconv-tap * 1x1 weight
    b_ref:   (4*C_out, 1)       fused bias
    out_ref: (1, 4*C_out, THW)  lane-dense output (pixels on lanes)
    """
    z = jnp.dot(w_ref[...], x_ref[0], preferred_element_type=jnp.float32)
    out_ref[0] = jax.nn.sigmoid(z + b_ref[...])


def _pick_tile_hw(hw, target=2048):
    """Largest multiple-of-128 divisor of hw up to `target`; else the full extent."""
    best = None
    t = 128
    while t <= min(hw, target):
        if hw % t == 0:
            best = t
        t += 128
    return best if best is not None else hw


def simple_head_fpn(x_nchw, params):
    """Forward pass matching the PyTorch SimpleHead_FPN module (eval-mode BN)."""
    N, C_in, H, W = x_nchw.shape
    gamma, beta, mean, var = (params["bn_gamma"], params["bn_beta"],
                              params["bn_mean"], params["bn_var"])
    wd = params["deconv_w"]   # (C_in, 256, 2, 2)  PyTorch ConvTranspose2d layout
    bd = params["deconv_b"]   # (256,)
    wf = params["final_w"]    # (C_out, 256, 1, 1) PyTorch Conv2d layout
    bf = params["final_b"]    # (C_out,)
    C_out = wf.shape[0]
    HW = H * W
    R = 4 * C_out

    # ---- offline composition: BN * deconv tap (kh,kw) * 1x1 -> (R, C_in) ----
    # z[r, pix] = sum_c W_fused[r, c] * x[c, pix] + b_fused[r],  r = (kh*2+kw)*C_out+co
    wf_mat = wf[:, :, 0, 0]                                   # (C_out, 256)
    wd_taps = jnp.transpose(wd, (2, 3, 0, 1))                 # (2, 2, C_in, 256)
    w_comp = jnp.einsum("klcm,om->kloc", wd_taps, wf_mat)     # (2, 2, C_out, C_in)
    bn_scale = gamma / jnp.sqrt(var + BN_EPS)                 # (C_in,)
    bn_shift = beta - mean * bn_scale                         # (C_in,)
    w_fused = (w_comp * bn_scale[None, None, None, :]).reshape(R, C_in)
    b_fused = (jnp.einsum("kloc,c->klo", w_comp, bn_shift)
               + (wf_mat @ bd + bf)[None, None, :]).reshape(R, 1)

    tile_hw = _pick_tile_hw(HW)
    grid = (N, HW // tile_hw)

    x_rows = x_nchw.reshape(N, C_in, HW)   # contiguous reshape: no HBM round trip

    out = pl.pallas_call(
        _head_kernel,
        out_shape=jax.ShapeDtypeStruct((N, R, HW), jnp.float32),
        grid_spec=pltpu.PrefetchScalarGridSpec(
            num_scalar_prefetch=0,
            grid=grid,
            in_specs=[
                pl.BlockSpec((1, C_in, tile_hw), lambda n, j: (n, 0, j)),
                pl.BlockSpec((R, C_in), lambda n, j: (0, 0)),
                pl.BlockSpec((R, 1), lambda n, j: (0, 0)),
            ],
            out_specs=pl.BlockSpec((1, R, tile_hw), lambda n, j: (n, 0, j)),
        ),
        compiler_params=pltpu.CompilerParams(
            dimension_semantics=("parallel", "parallel")),
    )(x_rows, w_fused, b_fused)

    # ---- interleave the 4 taps back into NCHW (N, C_out, 2H, 2W) ----
    # TODO(synk): if the consumer accepts a tap-major / NHWC layout, this final
    # transpose (one HBM round trip on the output array) can be dropped.
    out = out.reshape(N, 2, 2, C_out, H, W)          # (n, kh, kw, co, h, w)
    out = jnp.transpose(out, (0, 3, 4, 1, 5, 2))     # (n, co, h, kh, w, kw)
    return out.reshape(N, C_out, 2 * H, 2 * W)


def reference_forward(x_nchw, params):
    """Plain-JAX reference with the original (unfused) math for verification."""
    gamma, beta, mean, var = (params["bn_gamma"], params["bn_beta"],
                              params["bn_mean"], params["bn_var"])
    wd, bd = params["deconv_w"], params["deconv_b"]
    wf, bf = params["final_w"], params["final_b"]
    N, C_in, H, W = x_nchw.shape
    C_out = wf.shape[0]

    xn = ((x_nchw - mean[None, :, None, None]) /
          jnp.sqrt(var + BN_EPS)[None, :, None, None] *
          gamma[None, :, None, None] + beta[None, :, None, None])
    # ConvTranspose2d k=2 s=2: out[n,o,2h+k,2w+l] = sum_c xn[n,c,h,w]*wd[c,o,k,l]
    y = jnp.einsum("nchw,cokl->nohkwl", xn, wd).reshape(N, DECONV_C, 2 * H, 2 * W)
    y = y + bd[None, :, None, None]
    z = jnp.einsum("nihw,oi->nohw", y, wf[:, :, 0, 0]) + bf[None, :, None, None]
    return jax.nn.sigmoid(z)


def make_params(key, in_channels, out_channels):
    ks = jax.random.split(key, 8)
    return {
        "bn_gamma": jax.random.normal(ks[0], (in_channels,), jnp.float32) * 0.5 + 1.0,
        "bn_beta": jax.random.normal(ks[1], (in_channels,), jnp.float32) * 0.1,
        "bn_mean": jax.random.normal(ks[2], (in_channels,), jnp.float32) * 0.1,
        "bn_var": jax.random.uniform(ks[3], (in_channels,), jnp.float32, 0.5, 1.5),
        "deconv_w": jax.random.normal(ks[4], (in_channels, DECONV_C, 2, 2),
                                      jnp.float32) * 0.05,
        "deconv_b": jax.random.normal(ks[5], (DECONV_C,), jnp.float32) * 0.05,
        "final_w": jax.random.normal(ks[6], (out_channels, DECONV_C, 1, 1),
                                     jnp.float32) * 0.05,
        "final_b": jax.random.normal(ks[7], (out_channels,), jnp.float32) * 0.05,
    }


if __name__ == "__main__":
    key = jax.random.PRNGKey(0)
    k_x, k_p = jax.random.split(key)

    N, C_in, H, W = 2, 8, 16, 16
    C_out = 3

    x = jax.random.normal(k_x, (N, C_in, H, W), jnp.float32)
    params = make_params(k_p, C_in, C_out)

    fwd = jax.jit(simple_head_fpn)
    out = jax.block_until_ready(fwd(x, params))
    assert out.shape == (N, C_out, 2 * H, 2 * W), out.shape

    ref = jax.block_until_ready(reference_forward(x, params))
    # Slightly loosened tolerance: the offline weight composition reorders the
    # f32 contraction relative to the layer-by-layer reference.
    assert jnp.allclose(out, ref, rtol=1e-4, atol=1e-4), (
        float(jnp.max(jnp.abs(out - ref))))

    print("KERNEL_OK")
</pallas_src>

<mosaic_0001>
module attributes {stable_mosaic.version = 11 : i64} {
  func.func @_head_kernel(%arg0: i32, %arg1: i32, %arg2: memref<1x8x256xf32, #tpu.memory_space<vmem>>, %arg3: memref<12x8xf32, #tpu.memory_space<vmem>>, %arg4: memref<12x1xf32, #tpu.memory_space<vmem>>, %arg5: memref<1x12x256xf32, #tpu.memory_space<vmem>>) attributes {dimension_semantics = [#tpu.dimension_semantics<parallel>, #tpu.dimension_semantics<parallel>], iteration_bounds = array<i64: 2, 1>, scalar_prefetch = 0 : i64, scratch_operands = 0 : i64, tpu.core_type = #tpu.core_type<tc>, window_params = [{transform_indices = @transform_0, window_bounds = array<i64: 1, 8, 256>}, {pipeline_mode = #tpu.pipeline_mode<synchronous>, transform_indices = @transform_1, window_bounds = array<i64: 12, 8>}, {pipeline_mode = #tpu.pipeline_mode<synchronous>, transform_indices = @transform_2, window_bounds = array<i64: 12, 1>}, {transform_indices = @transform_3, window_bounds = array<i64: 1, 12, 256>}]} {
    %c0 = arith.constant 0 : index
    %c0_0 = arith.constant 0 : index
    %0 = vector.load %arg3[%c0, %c0_0] : memref<12x8xf32, #tpu.memory_space<vmem>>, vector<12x8xf32>
    %c0_1 = arith.constant 0 : index
    %c0_2 = arith.constant 0 : index
    %c0_3 = arith.constant 0 : index
    %1 = vector.load %arg2[%c0_1, %c0_2, %c0_3] : memref<1x8x256xf32, #tpu.memory_space<vmem>>, vector<1x8x256xf32>
    %2 = vector.shape_cast %1 : vector<1x8x256xf32> to vector<8x256xf32>
    %cst = arith.constant dense<0.000000e+00> : vector<12x256xf32>
    %3 = tpu.matmul %0, %2, %cst {dimension_numbers = #tpu.dot_dimension_numbers<[1], [0], [0], [1], [0, 0, 1, 1], [], []>} : vector<12x8xf32>, vector<8x256xf32>, vector<12x256xf32> -> vector<12x256xf32>
    %c0_4 = arith.constant 0 : index
    %c0_5 = arith.constant 0 : index
    %4 = vector.load %arg4[%c0_4, %c0_5] : memref<12x1xf32, #tpu.memory_space<vmem>>, vector<12x1xf32>
    %5 = vector.broadcast %4 : vector<12x1xf32> to vector<12x256xf32>
    %6 = arith.addf %3, %5 : vector<12x256xf32>
    %7 = arith.negf %6 : vector<12x256xf32>
    %8 = math.exp %7 : vector<12x256xf32>
    %cst_6 = arith.constant 1.000000e+00 : f32
    %9 = vector.broadcast %cst_6 : f32 to vector<12x256xf32>
    %10 = arith.addf %9, %8 : vector<12x256xf32>
    %11 = arith.divf %9, %10 : vector<12x256xf32>
    %c0_7 = arith.constant 0 : index
    %c0_8 = arith.constant 0 : index
    %c0_9 = arith.constant 0 : index
    %12 = vector.load %arg5[%c0_7, %c0_8, %c0_9] : memref<1x12x256xf32, #tpu.memory_space<vmem>>, vector<1x12x256xf32>
    %13 = vector.shape_cast %12 : vector<1x12x256xf32> to vector<12x256xf32>
    %14 = vector.shape_cast %11 : vector<12x256xf32> to vector<1x12x256xf32>
    tpu.vector_store %arg5[%c0_7, %c0_8, %c0_9], %14 {strides = array<i32>} : memref<1x12x256xf32, #tpu.memory_space<vmem>>, vector<1x12x256xf32>,
    return
  }
  func.func @transform_0(%arg0: i32, %arg1: i32) -> (i32, i32, i32) {
    %c0_i32 = arith.constant 0 : i32
    %c0_i32_0 = arith.constant 0 : i32
    return %arg0, %c0_i32, %arg1 : i32, i32, i32
  }
  func.func @transform_1(%arg0: i32, %arg1: i32) -> (i32, i32) {
    %c0_i32 = arith.constant 0 : i32
    %c0_i32_0 = arith.constant 0 : i32
    %c0_i32_1 = arith.constant 0 : i32
    return %c0_i32, %c0_i32_0 : i32, i32
  }
  func.func @transform_2(%arg0: i32, %arg1: i32) -> (i32, i32) {
    %c0_i32 = arith.constant 0 : i32
    %c0_i32_0 = arith.constant 0 : i32
    %c0_i32_1 = arith.constant 0 : i32
    return %c0_i32, %c0_i32_0 : i32, i32
  }
  func.func @transform_3(%arg0: i32, %arg1: i32) -> (i32, i32, i32) {
    %c0_i32 = arith.constant 0 : i32
    %c0_i32_0 = arith.constant 0 : i32
    return %arg0, %c0_i32, %arg1 : i32, i32, i32
  }
}

</mosaic_0001>

<llo_original>
// kernel: simple_head_fpn.1
$region0: #{simple_head_fpn.1}
  #allocation0 [shape = 'u32[]', space=smem, size = 0x4, offset = 0x4, fixed_abs, tag = 'smem constant byte address 0x4 - core index']
  #allocation1 [shape = 'u32[144,128]{1,0:T(1,128)}', space=vmem, size = 0x12000, scoped, tag = 'internal scratch']
  %s0 = inlined_call_operand.vmem [shape: f32[2,8,256], index: 0, kind: input, shape index: {}]
  %s1 = inlined_call_operand.vmem [shape: f32[12,8], index: 1, kind: input, shape index: {}]
  %s2 = inlined_call_operand.vmem [shape: f32[12,1], index: 2, kind: input, shape index: {}]
  %s3 = inlined_call_operand.vmem [shape: f32[2,12,256], index: 3, kind: output, shape index: {}]
  %s4 = sld [smem:[#allocation0]]
  $region45: #{simple_head_fpn.1} parent=0
    _
  %s6 = ssub.s32 1, %s4
  %s7 = scalar_select 0, %s6, %s4
  loop: start=0, step=1, limit=4
  $region2: #{simple_head_fpn.1} parent=0 // loop_pre_header
    _
  $region3: #{simple_head_fpn.1} parent=0 // loop_header
    %s9 = sphi 0, %s13
    %p10 = scmp.ge.s32.totalorder %s9, 4
    %s16 = sphi 0, %s28
    %s17 = sphi 0, %s24
    %s18 = sphi 0, %s16
    %s19 = sphi 0, %s17
    %s20 = sphi 0, %s18
    %s21 = sphi 0, %s19
    %s33 = sphi 0, %s35
    %s36 = sphi 0, %s33
    %s37 = sphi 0, %s36
    %s53 = sphi 0, %s37
    %s57 = sphi 0, %s57
    %s59 = sphi 0, %s57
    %s60 = sphi 0, %s59
    %s74 = sphi 0, %s60
    %s78 = sphi 0, %s78
    %s80 = sphi 0, %s78
    %s81 = sphi 0, %s80
    %s95 = sphi 0, %s81
    %s103 = sphi 0, %s105
    %s106 = sphi 0, %s103
    %s107 = sphi 0, %s106
    %s123 = sphi 0, %s107
  $region4: #{simple_head_fpn.1} parent=0 // loop_header_branch
    %12 = sbr.rel (%p10) target = $region8
  $region5: #{simple_head_fpn.1} parent=0 // loop_body
    %s14 = ssub.s32 %s9, 1
    %s15 = ssub.s32 %s9, 2
    %s22 = sadd.s32 1, %s17
    %p23 = scmp.ge.s32.totalorder %s22, 1
    %s24 = scalar_select %p23, 0, %s22
    %s25 = sadd.s32 1, %s16
    %s26 = scalar_select %p23, %s25, %s16
    %p27 = scmp.ge.s32.totalorder %s26, 2
    %s28 = scalar_select %p27, 0, %s26
    %s29 = ssub.s32 %s16, %s28
    %s30 = ssub.s32 %s17, %s24
    %s31 = sor.u32 %s29, %s30
    %p32 = scmp.eq.s32.totalorder %s31, 0
    %s34 = sadd.s32 %s33, 1
    %s35 = scalar_select %p32, %s33, %s34
    %p38 = pneg %p32
    %p39 = scmp.eq.s32.totalorder %s9, 1
    %p40 = por %p38, %p39
    %p41 = scmp.ne.s32.totalorder %s33, %s36
    %p42 = scmp.eq.s32.totalorder %s9, 0
    %p43 = por %p41, %p42
    %p44 = scmp.ne.s32.totalorder %s33, %s36
    %p45 = scmp.eq.s32.totalorder %s14, 1
    %p46 = por %p44, %p45
    %p47 = scmp.ne.s32.totalorder %s36, %s37
    %p48 = scmp.eq.s32.totalorder %s14, 0
    %p49 = por %p47, %p48
    %p50 = scmp.ne.s32.totalorder %s36, %s37
    %p51 = scmp.eq.s32.totalorder %s15, 1
    %p52 = por %p50, %p51
    %p54 = scmp.ne.s32.totalorder %s37, %s53
    %p55 = scmp.eq.s32.totalorder %s15, 0
    %p56 = por %p54, %p55
    %s58 = sadd.s32 %s57, 1
    %p61 = scmp.eq.s32.totalorder %s9, 1
    %p62 = scmp.ne.s32.totalorder %s57, %s59
    %p63 = scmp.eq.s32.totalorder %s9, 0
    %p64 = por %p62, %p63
    %p65 = scmp.ne.s32.totalorder %s57, %s59
    %p66 = scmp.eq.s32.totalorder %s14, 1
    %p67 = por %p65, %p66
    %p68 = scmp.ne.s32.totalorder %s59, %s60
    %p69 = scmp.eq.s32.totalorder %s14, 0
    %p70 = por %p68, %p69
    %p71 = scmp.ne.s32.totalorder %s59, %s60
    %p72 = scmp.eq.s32.totalorder %s15, 1
    %p73 = por %p71, %p72
    %p75 = scmp.ne.s32.totalorder %s60, %s74
    %p76 = scmp.eq.s32.totalorder %s15, 0
    %p77 = por %p75, %p76
    %s79 = sadd.s32 %s78, 1
    %p82 = scmp.eq.s32.totalorder %s9, 1
    %p83 = scmp.ne.s32.totalorder %s78, %s80
    %p84 = scmp.eq.s32.totalorder %s9, 0
    %p85 = por %p83, %p84
    %p86 = scmp.ne.s32.totalorder %s78, %s80
    %p87 = scmp.eq.s32.totalorder %s14, 1
    %p88 = por %p86, %p87
    %p89 = scmp.ne.s32.totalorder %s80, %s81
    %p90 = scmp.eq.s32.totalorder %s14, 0
    %p91 = por %p89, %p90
    %p92 = scmp.ne.s32.totalorder %s80, %s81
    %p93 = scmp.eq.s32.totalorder %s15, 1
    %p94 = por %p92, %p93
    %p96 = scmp.ne.s32.totalorder %s81, %s95
    %p97 = scmp.eq.s32.totalorder %s15, 0
    %p98 = por %p96, %p97
    %s99 = ssub.s32 %s16, %s28
    %s100 = ssub.s32 %s17, %s24
    %s101 = sor.u32 %s99, %s100
    %p102 = scmp.eq.s32.totalorder %s101, 0
    %s104 = sadd.s32 %s103, 1
    %s105 = scalar_select %p102, %s103, %s104
    %p108 = pneg %p102
    %p109 = scmp.eq.s32.totalorder %s9, 1
    %p110 = por %p108, %p109
    %p111 = scmp.ne.s32.totalorder %s103, %s106
    %p112 = scmp.eq.s32.totalorder %s9, 0
    %p113 = por %p111, %p112
    %p114 = scmp.ne.s32.totalorder %s103, %s106
    %p115 = scmp.eq.s32.totalorder %s14, 1
    %p116 = por %p114, %p115
    %p117 = scmp.ne.s32.totalorder %s106, %s107
    %p118 = scmp.eq.s32.totalorder %s14, 0
    %p119 = por %p117, %p118
    %p120 = scmp.ne.s32.totalorder %s106, %s107
    %p121 = scmp.eq.s32.totalorder %s15, 1
    %p122 = por %p120, %p121
    %p124 = scmp.ne.s32.totalorder %s107, %s123
    %p125 = scmp.eq.s32.totalorder %s15, 0
    %p126 = por %p124, %p125
    %p127 = scmp.le.s32.totalorder 1, %s9
    %p128 = scmp.lt.s32.totalorder %s9, 3
    %p129 = pnand %p127, %p128
    %p130 = pneg %p129
    // Predicated region
    $region9: #{simple_head_fpn.1} parent=5 // pred_check
      _
    $region10: #{simple_head_fpn.1} parent=5 // pred_check_branch
      %132 = sbr.rel (%p129) target = $region12
    $region11: #{simple_head_fpn.1} parent=5 // pred_region
      %s133 = ssub.s32 %s9, 1
      // Predicated region
      $region13: #{simple_head_fpn.1} parent=11 // pred_check
        %p134 = pneg %p70
      $region14: #{simple_head_fpn.1} parent=11 // pred_check_branch
        %136 = sbr.rel (%p134) target = $region16
      $region15: #{simple_head_fpn.1} parent=11 // pred_region
        _
      $region16: #{simple_head_fpn.1} parent=11 // pred_fallthru
        _
      // Predicated region
      $region17: #{simple_head_fpn.1} parent=11 // pred_check
        %p137 = pneg %p91
      $region18: #{simple_head_fpn.1} parent=11 // pred_check_branch
        %139 = sbr.rel (%p137) target = $region20
      $region19: #{simple_head_fpn.1} parent=11 // pred_region
        _
      $region20: #{simple_head_fpn.1} parent=11 // pred_fallthru
        _
    $region12: #{simple_head_fpn.1} parent=5 // pred_fallthru
      _
    %p140 = scmp.lt.s32.totalorder %s9, 2
    // Predicated region
    $region21: #{simple_head_fpn.1} parent=5 // pred_check
      %p141 = pneg %p140
    $region22: #{simple_head_fpn.1} parent=5 // pred_check_branch
      %143 = sbr.rel (%p141) target = $region24
    $region23: #{simple_head_fpn.1} parent=5 // pred_region
      // Predicated region
      $region25: #{simple_head_fpn.1} parent=23 // pred_check
        %p144 = pneg %p43
      $region26: #{simple_head_fpn.1} parent=23 // pred_check_branch
        %146 = sbr.rel (%p144) target = $region28
      $region27: #{simple_head_fpn.1} parent=23 // pred_region
        %s147 = smul.u32 2, %s17
        %p148 = scmp.lt.s32.totalorder %s16, 1
        %s149 = scalar_select %p148, %s16, 1
        %p150 = scmp.lt.s32.totalorder %s147, 1
        %s151 = scalar_select %p150, %s147, 1
        %s152 = smul.addr %s149, 2
        %s153 = sadd.s32 %s151, %s152
        %s154 = smul.addr %s153, 8
        %s155 = scalar_lea.vmem %s0, %s154
        %s156 = smul.u32 2, %s17
      $region28: #{simple_head_fpn.1} parent=23 // pred_fallthru
        _
    $region24: #{simple_head_fpn.1} parent=5 // pred_fallthru
      _
    %p157 = scmp.le.s32.totalorder 1, %s9
    %p158 = scmp.lt.s32.totalorder %s9, 3
    %p159 = pnand %p157, %p158
    %p160 = pneg %p159
    // Predicated region
    $region29: #{simple_head_fpn.1} parent=5 // pred_check
      _
    $region30: #{simple_head_fpn.1} parent=5 // pred_check_branch
      %162 = sbr.rel (%p159) target = $region32
    $region31: #{simple_head_fpn.1} parent=5 // pred_region
      %s163 = ssub.s32 %s9, 1
      %s164 = smul.u32 2, %s19
      %p165 = scmp.lt.s32.totalorder %s18, 1
      %s166 = scalar_select %p165, %s18, 1
      %p167 = scmp.lt.s32.totalorder %s164, 1
      %s168 = scalar_select %p167, %s164, 1
      %s169 = smul.addr %s166, 2
      %s170 = sadd.s32 %s168, %s169
      %s171 = smul.addr %s170, 8
      %s172 = scalar_lea.vmem %s0, %s171
      %p173 = pneg %p49
      %p174 = pneg %p46
      %p175 = pneg %p70
      %p176 = pneg %p67
      %p177 = pneg %p91
      %p178 = pneg %p88
      %p179 = pneg %p119
      %p180 = pneg %p116
      %s181 = smul.u32 2, %s19
      %p182 = scmp.lt.s32.totalorder %s18, 1
      %s183 = scalar_select %p182, %s18, 1
      %p184 = scmp.lt.s32.totalorder %s181, 1
      %s185 = scalar_select %p184, %s181, 1
      %s186 = smul.addr %s183, 4
      %s187 = sadd.s32 %s185, %s186
      %s188 = smul.addr %s187, 8
      %s189 = scalar_lea.vmem %s3, %s188
      %s190 = smul.u32 2, %s19
      %p191 = scmp.lt.s32.totalorder %s18, 1
      %s192 = scalar_select %p191, %s18, 1
      %p193 = scmp.lt.s32.totalorder %s190, 1
      %s194 = scalar_select %p193, %s190, 1
      %s195 = smul.addr %s192, 2
      %s196 = sadd.s32 %s194, %s195
      %s197 = smul.addr %s196, 8
      %s198 = scalar_lea.vmem %s0, %s197
      %s199 = smul.u32 2, %s19
      %s200 = smul.u32 2, %s19
      %p201 = scmp.lt.s32.totalorder %s18, 1
      %s202 = scalar_select %p201, %s18, 1
      %p203 = scmp.lt.s32.totalorder %s200, 1
      %s204 = scalar_select %p203, %s200, 1
      %s205 = smul.addr %s202, 4
      %s206 = sadd.s32 %s204, %s205
      %s207 = smul.addr %s206, 8
      %s208 = scalar_lea.vmem %s3, %s207
      %s209 = smul.u32 2, %s19
      %v210 = vld [vmem:[%s1] sm:$0xff]
      %v211 = vld [vmem:[%s1 + $0x8] sm:$0xf]
      %v212 = vld [vmem:[%s198] sm:$0xff]
      %v213 = vld [vmem:[%s198 + $0x8] sm:$0xff]
      %v214 = vld [vmem:[%s2] sm:$0xff]
      %v215 = vld [vmem:[%s2 + $0x8] sm:$0xf]
      %217 = vset.pattern.permute.xlu0 0
      %218 = vperm.xlu0 %217, %v214
      %v219 = vpop.permute.xlu0 %218
      %222 = vset.pattern.permute.xlu0 0
      %223 = vperm.xlu0 %222, %v215
      %v224 = vpop.permute.xlu0 %223
      %vm226 = vcmask 64512
      %v228 = vsel %vm226, %v210, 0
      %v231 = vsel %vm226, %v211, 0
      %233 = vmatprep.subr.mxu0 0.0
      %234 = vmatpush1.msra.mxu0 0.0
      %235 = vmatprep.subr.mxu0 0.0
      %236 = vmatpush1.msra.mxu0 0.0
      %237 = vmatprep.subr.mxu0 0.0
      %238 = vmatpush1.msra.mxu0 0.0
      %239 = vmatprep.subr.mxu0 0.0
      %240 = vmatpush1.msra.mxu0 0.0
      %241 = vmatprep.subr.mxu0 0.0
      %242 = vmatpush1.msra.mxu0 0.0
      %243 = vmatprep.subr.mxu0 0.0
      %244 = vmatpush1.msra.mxu0 0.0
      %245 = vmatprep.subr.mxu0 0.0
      %246 = vmatpush1.msra.mxu0 0.0
      %247 = vmatprep.subr.mxu0 0.0
      %248 = vmatpush1.msra.mxu0 0.0
      %249 = vmatprep.subr.mxu0 0.0
      %250 = vmatpush1.msra.mxu0 0.0
      %251 = vmatprep.subr.mxu0 0.0
      %252 = vmatpush1.msra.mxu0 0.0
      %253 = vmatprep.subr.mxu0 0.0
      %254 = vmatpush1.msra.mxu0 0.0
      %255 = vmatprep.subr.mxu0 0.0
      %256 = vmatpush1.msra.mxu0 0.0
      %257 = vmatprep.subr.mxu0 0.0
      %258 = vmatpush1.msra.mxu0 0.0
      %259 = vmatprep.subr.mxu0 0.0
      %260 = vmatpush1.msra.mxu0 0.0
      %261 = vmatprep.subr.mxu0 0.0
      %262 = vmatpush1.msra.mxu0 0.0
      %263 = vmatprep.subr.mxu0 %v213
      %264 = vmatpush1.msra.mxu0 %v212
      %265 = vmatprep.subr.mxu0 0.0
      %266 = vmatpush2.msra.mxu0 0.0
      %267 = vmatprep.subr.mxu0 0.0
      %268 = vmatpush2.msra.mxu0 0.0
      %269 = vmatprep.subr.mxu0 0.0
      %270 = vmatpush2.msra.mxu0 0.0
      %271 = vmatprep.subr.mxu0 0.0
      %272 = vmatpush2.msra.mxu0 0.0
      %273 = vmatprep.subr.mxu0 0.0
      %274 = vmatpush2.msra.mxu0 0.0
      %275 = vmatprep.subr.mxu0 0.0
      %276 = vmatpush2.msra.mxu0 0.0
      %277 = vmatprep.subr.mxu0 0.0
      %278 = vmatpush2.msra.mxu0 0.0
      %279 = vmatprep.subr.mxu0 0.0
      %280 = vmatpush2.msra.mxu0 0.0
      %281 = vmatprep.subr.mxu0 0.0
      %282 = vmatpush2.msra.mxu0 0.0
      %283 = vmatprep.subr.mxu0 0.0
      %284 = vmatpush2.msra.mxu0 0.0
      %285 = vmatprep.subr.mxu0 0.0
      %286 = vmatpush2.msra.mxu0 0.0
      %287 = vmatprep.subr.mxu0 0.0
      %288 = vmatpush2.msra.mxu0 0.0
      %289 = vmatprep.subr.mxu0 0.0
      %290 = vmatpush2.msra.mxu0 0.0
      %291 = vmatprep.subr.mxu0 0.0
      %292 = vmatpush2.msra.mxu0 0.0
      %293 = vmatprep.subr.mxu0 0.0
      %294 = vmatpush2.msra.mxu0 0.0
      %295 = vmatprep.subr.mxu0 0.0
      %296 = vmatpush2.msra.mxu0 0.0
      %297 = vmatprep.mubr.f32.mxu0 0.0
      %298 = vmatmul.mubr.f32.gmra.mxu0 %v228
      %v299 = vpop.f32.mrf.mxu0
      %v300 = vadd.f32 %v219, %v299
      %v301 = vpop.f32.mrf.mxu0
      %v302 = vadd.f32 %v219, %v301
      %303 = vmatprep.mubr.f32.mxu0 0.0
      %304 = vmatmul.mubr.f32.gmra.mxu0 %v231
      %v305 = vpop.f32.mrf.mxu0
      %v306 = vadd.f32 %v224, %v305
      %v307 = vpop.f32.mrf.mxu0
      %v308 = vadd.f32 %v224, %v307
      %309 = vdwg.mxu0
      %v310 = vxor.u32 %v300, 2147483648
      %v311 = vxor.u32 %v302, 2147483648
      %v312 = vxor.u32 %v306, 2147483648
      %v313 = vxor.u32 %v308, 2147483648
      %v314 = vmul.f32 %v310, 1.442695
      %v315 = vpow.pop %v314
      %v316 = vmul.f32 %v311, 1.442695
      %v317 = vpow.pop %v316
      %v318 = vmul.f32 %v312, 1.442695
      %v319 = vpow.pop %v318
      %v320 = vmul.f32 %v313, 1.442695
      %v321 = vpow.pop %v320
      %v322 = vadd.f32 %v315, 1.0
      %v323 = vadd.f32 %v317, 1.0
      %v324 = vadd.f32 %v319, 1.0
      %v325 = vadd.f32 %v321, 1.0
      %v326 = vrcp.pop %v322
      %v327 = vmul.f32 1.0, %v326
      %v328 = vrcp.pop %v323
      %v329 = vmul.f32 1.0, %v328
      %v330 = vrcp.pop %v324
      %v331 = vmul.f32 1.0, %v330
      %v332 = vrcp.pop %v325
      %v333 = vmul.f32 1.0, %v332
      %334 = vst [vmem:[%s208] sm:$0xff] %v327
      %335 = vst [vmem:[%s208 + $0x8] sm:$0xff] %v329
      %336 = vst [vmem:[%s208 + $0x10] sm:$0xf] %v331
      %337 = vst [vmem:[%s208 + $0x18] sm:$0xf] %v333
      %s338 = smul.u32 2, %s19
      %p339 = scmp.lt.s32.totalorder %s18, 1
      %s340 = scalar_select %p339, %s18, 1
      %p341 = scmp.lt.s32.totalorder %s338, 1
      %s342 = scalar_select %p341, %s338, 1
      %s343 = smul.addr %s340, 4
      %s344 = sadd.s32 %s342, %s343
      %s345 = smul.addr %s344, 8
      %s346 = scalar_lea.vmem %s3, %s345
      // Predicated region
      $region33: #{simple_head_fpn.1} parent=31 // pred_check
        %p347 = pneg %p116
      $region34: #{simple_head_fpn.1} parent=31 // pred_check_branch
        %349 = sbr.rel (%p347) target = $region36
      $region35: #{simple_head_fpn.1} parent=31 // pred_region
        %s350 = smul.u32 2, %s19
      $region36: #{simple_head_fpn.1} parent=31 // pred_fallthru
        _
    $region32: #{simple_head_fpn.1} parent=5 // pred_fallthru
      _
    %p351 = scmp.le.s32.totalorder 2, %s9
    // Predicated region
    $region37: #{simple_head_fpn.1} parent=5 // pred_check
      %p352 = pneg %p351
    $region38: #{simple_head_fpn.1} parent=5 // pred_check_branch
      %354 = sbr.rel (%p352) target = $region40
    $region39: #{simple_head_fpn.1} parent=5 // pred_region
      %s355 = ssub.s32 %s9, 2
      // Predicated region
      $region41: #{simple_head_fpn.1} parent=39 // pred_check
        %p356 = pneg %p122
      $region42: #{simple_head_fpn.1} parent=39 // pred_check_branch
        %358 = sbr.rel (%p356) target = $region44
      $region43: #{simple_head_fpn.1} parent=39 // pred_region
        %s359 = smul.u32 2, %s21
        %p360 = scmp.lt.s32.totalorder %s20, 1
        %s361 = scalar_select %p360, %s20, 1
        %p362 = scmp.lt.s32.totalorder %s359, 1
        %s363 = scalar_select %p362, %s359, 1
        %s364 = smul.addr %s361, 4
        %s365 = sadd.s32 %s363, %s364
        %s366 = smul.addr %s365, 8
        %s367 = scalar_lea.vmem %s3, %s366
      $region44: #{simple_head_fpn.1} parent=39 // pred_fallthru
        _
    $region40: #{simple_head_fpn.1} parent=5 // pred_fallthru
      _
  $region6: #{simple_head_fpn.1} parent=0 // loop_footer
    %s13 = sadd.s32 1, %s9
  $region7: #{simple_head_fpn.1} parent=0 // loop_footer_branch
    %8 = sbr.rel target = $region3
  $region8: #{simple_head_fpn.1} parent=0 // loop_exit
    _

</llo_original>
